<compile_context>
chip_gen: v5e
topology: v5e:2x2
jax: 0.10.0
libtpu: 0.0.40
codegen_flags: <defaults>
</compile_context>

<pallas_src>
from itertools import combinations
from math import comb

import jax
import jax.numpy as jnp
import numpy as np
from jax.experimental import pallas as pl
from jax.experimental.pallas import tpu as pltpu


# ----------------------------------------------------------------------------
# Parameter construction (mirrors Powerset.build_mapping)
# ----------------------------------------------------------------------------
def build_mapping(num_classes: int, max_set_size: int) -> np.ndarray:
    num_powerset_classes = sum(comb(num_classes, i) for i in range(max_set_size + 1))
    mapping = np.zeros((num_powerset_classes, num_classes), dtype=np.float32)
    k = 0
    for set_size in range(max_set_size + 1):
        for current_set in combinations(range(num_classes), set_size):
            mapping[k, list(current_set)] = 1.0
            k += 1
    return mapping


# ----------------------------------------------------------------------------
# Pallas kernels
#   map_ref : (P, C)     mapping, resident VMEM block (constant index_map)
#   ps_ref  : (tile, P)  powerset log-probs, native dtype
#   out_ref : (tile, C)  multilabel block of the (N, C) output
# ----------------------------------------------------------------------------
def _powerset_hard_kernel(map_ref, ps_ref, out_ref):
    ps = ps_ref[...]                                       # (tile, P), native dtype
    p = ps.shape[-1]
    iota = jax.lax.broadcasted_iota(jnp.int32, ps.shape, 1)
    row_max = jnp.max(ps, axis=-1, keepdims=True)
    # first-occurrence argmax via min over matching indices (robust lowering)
    first_idx = jnp.min(jnp.where(ps == row_max, iota, p), axis=-1, keepdims=True)
    onehot = jnp.where(iota == first_idx, 1.0, 0.0)        # f32 one-hot, no extra cast
    out_ref[...] = jnp.dot(onehot, map_ref[...], preferred_element_type=jnp.float32)


def _powerset_soft_kernel(map_ref, ps_ref, out_ref):
    probs = jnp.exp(ps_ref[...].astype(jnp.float32))       # cast in-kernel; exp -> EUP
    out_ref[...] = jnp.dot(probs, map_ref[...], preferred_element_type=jnp.float32)


# ----------------------------------------------------------------------------
# Wrapper
# ----------------------------------------------------------------------------
def _choose_tile(n: int, tile_n: int) -> int:
    """Row tile: big (amortize ~0.35us/step), lane-aligned, >= 4 grid steps
    when N permits (>= 2 steps per v7x TensorCore for per-core pipelining)."""
    if n <= 512:
        return n                                  # single full-extent block
    cap = (min(max(tile_n, 256), 4096) // 128) * 128
    t = max(256, min(cap, ((pl.cdiv(n, 4) + 127) // 128) * 128))
    return t


def powerset_to_multilabel(powerset: jax.Array, mapping: jax.Array,
                           soft: bool = False, tile_n: int = 2048) -> jax.Array:
    """powerset: (B, F, P); mapping: (P, C)  ->  multilabel (B, F, C) float32."""
    B, F, P = powerset.shape
    Pm, C = mapping.shape
    assert P == Pm
    N = B * F
    tile = _choose_tile(N, tile_n)
    grid = (pl.cdiv(N, tile),)

    ps2d = powerset.reshape(N, P)                          # free reshape, native dtype
    map_f32 = jnp.asarray(mapping, dtype=jnp.float32)      # (P, C), natural orientation

    kernel = _powerset_soft_kernel if soft else _powerset_hard_kernel

    cost = pl.CostEstimate(
        flops=2 * N * P * C,
        transcendentals=(N * P if soft else 0),
        bytes_accessed=N * P * ps2d.dtype.itemsize + P * C * 4 + N * C * 4,
    )

    out_nc = pl.pallas_call(
        kernel,
        out_shape=jax.ShapeDtypeStruct((N, C), jnp.float32),
        grid_spec=pltpu.PrefetchScalarGridSpec(
            num_scalar_prefetch=0,
            grid=grid,
            in_specs=[
                pl.BlockSpec((P, C), lambda i: (0, 0)),        # resident mapping block
                pl.BlockSpec((tile, P), lambda i: (i, 0)),     # streaming input rows
            ],
            out_specs=pl.BlockSpec((tile, C), lambda i: (i, 0)),  # direct (N, C) blocks
        ),
        compiler_params=pltpu.CompilerParams(
            dimension_semantics=("parallel",),
        ),
        cost_estimate=cost,
    )(map_f32, ps2d)

    # Pure metadata reshape back to the module's (B, F, C) convention - no
    # extra HBM pass (the previous version transposed a (C, N) result here).
    return out_nc.reshape(B, F, C)


# ----------------------------------------------------------------------------
# Pure-JAX reference (same semantics as the PyTorch module's forward)
# ----------------------------------------------------------------------------
def _reference(powerset, mapping, soft=False):
    if soft:
        probs = jnp.exp(powerset.astype(jnp.float32))
    else:
        idx = jnp.argmax(powerset, axis=-1)
        probs = jax.nn.one_hot(idx, powerset.shape[-1], dtype=jnp.float32)
    return probs @ mapping.astype(jnp.float32)


if __name__ == "__main__":
    num_classes, max_set_size = 4, 2
    mapping = jnp.asarray(build_mapping(num_classes, max_set_size))   # (11, 4)
    P = mapping.shape[0]

    key = jax.random.PRNGKey(0)

    # First shape: single-tile path (N <= 512).  Second: multi-step grid with a
    # masked (non-divisible) tail tile.  Both small, deterministic.
    for batch, frames in [(2, 173), (3, 250)]:
        k1, key = jax.random.split(key)
        logits = jax.random.normal(k1, (batch, frames, P), dtype=jnp.float32)
        log_probs = jax.nn.log_softmax(logits, axis=-1)

        # hard (default forward)
        out_hard = jax.block_until_ready(
            powerset_to_multilabel(log_probs, mapping, soft=False))
        ref_hard = _reference(log_probs, mapping, soft=False)
        np.testing.assert_allclose(np.asarray(out_hard), np.asarray(ref_hard), atol=1e-6)

        # soft
        out_soft = jax.block_until_ready(
            powerset_to_multilabel(log_probs, mapping, soft=True))
        ref_soft = _reference(log_probs, mapping, soft=True)
        np.testing.assert_allclose(np.asarray(out_soft), np.asarray(ref_soft),
                                   rtol=1e-5, atol=1e-6)

    print("KERNEL_OK")
</pallas_src>

<mosaic_0001>
module attributes {stable_mosaic.version = 11 : i64} {
  func.func @_powerset_hard_kernel(%arg0: i32, %arg1: memref<11x4xf32, #tpu.memory_space<vmem>>, %arg2: memref<346x11xf32, #tpu.memory_space<vmem>>, %arg3: memref<346x4xf32, #tpu.memory_space<vmem>>) attributes {dimension_semantics = [#tpu.dimension_semantics<parallel>], iteration_bounds = array<i64: 1>, scalar_prefetch = 0 : i64, scratch_operands = 0 : i64, tpu.core_type = #tpu.core_type<tc>, window_params = [{pipeline_mode = #tpu.pipeline_mode<synchronous>, transform_indices = @transform_0, window_bounds = array<i64: 11, 4>}, {transform_indices = @transform_1, window_bounds = array<i64: 346, 11>}, {transform_indices = @transform_2, window_bounds = array<i64: 346, 4>}]} {
    %c0 = arith.constant 0 : index
    %c0_0 = arith.constant 0 : index
    %0 = vector.load %arg2[%c0, %c0_0] : memref<346x11xf32, #tpu.memory_space<vmem>>, vector<346x11xf32>
    %1 = tpu.iota {dimensions = array<i32: 1>} : vector<346x11xi32>
    %cst = arith.constant dense<0xFF800000> : vector<346xf32>
    %2 = vector.multi_reduction <maximumf>, %0, %cst [1] : vector<346x11xf32> to vector<346xf32>
    %3 = vector.shape_cast %2 : vector<346xf32> to vector<346x1xf32>
    %4 = vector.broadcast %3 : vector<346x1xf32> to vector<346x11xf32>
    %5 = arith.cmpf oeq, %0, %4 : vector<346x11xf32>
    %c11_i32 = arith.constant 11 : i32
    %6 = vector.broadcast %c11_i32 : i32 to vector<346x11xi32>
    %7 = arith.select %5, %1, %6 : vector<346x11xi1>, vector<346x11xi32>
    %cst_1 = arith.constant dense<2147483647> : vector<346xi32>
    %8 = vector.multi_reduction <minsi>, %7, %cst_1 [1] : vector<346x11xi32> to vector<346xi32>
    %9 = vector.shape_cast %8 : vector<346xi32> to vector<346x1xi32>
    %10 = vector.broadcast %9 : vector<346x1xi32> to vector<346x11xi32>
    %11 = arith.cmpi eq, %1, %10 : vector<346x11xi32>
    %cst_2 = arith.constant 1.000000e+00 : f32
    %cst_3 = arith.constant 0.000000e+00 : f32
    %12 = vector.broadcast %cst_2 : f32 to vector<346x11xf32>
    %13 = vector.broadcast %cst_3 : f32 to vector<346x11xf32>
    %14 = arith.select %11, %12, %13 : vector<346x11xi1>, vector<346x11xf32>
    %c0_4 = arith.constant 0 : index
    %c0_5 = arith.constant 0 : index
    %15 = vector.load %arg1[%c0_4, %c0_5] : memref<11x4xf32, #tpu.memory_space<vmem>>, vector<11x4xf32>
    %cst_6 = arith.constant dense<0.000000e+00> : vector<346x4xf32>
    %16 = tpu.matmul %14, %15, %cst_6 {dimension_numbers = #tpu.dot_dimension_numbers<[1], [0], [0], [1], [0, 0, 1, 1], [], []>} : vector<346x11xf32>, vector<11x4xf32>, vector<346x4xf32> -> vector<346x4xf32>
    %c0_7 = arith.constant 0 : index
    %c0_8 = arith.constant 0 : index
    %17 = vector.load %arg3[%c0_7, %c0_8] : memref<346x4xf32, #tpu.memory_space<vmem>>, vector<346x4xf32>
    tpu.vector_store %arg3[%c0_7, %c0_8], %16 {strides = array<i32>} : memref<346x4xf32, #tpu.memory_space<vmem>>, vector<346x4xf32>,
    return
  }
  func.func @transform_0(%arg0: i32) -> (i32, i32) {
    %c0_i32 = arith.constant 0 : i32
    %c0_i32_0 = arith.constant 0 : i32
    %c0_i32_1 = arith.constant 0 : i32
    return %c0_i32, %c0_i32_0 : i32, i32
  }
  func.func @transform_1(%arg0: i32) -> (i32, i32) {
    %c0_i32 = arith.constant 0 : i32
    %c0_i32_0 = arith.constant 0 : i32
    return %arg0, %c0_i32 : i32, i32
  }
  func.func @transform_2(%arg0: i32) -> (i32, i32) {
    %c0_i32 = arith.constant 0 : i32
    %c0_i32_0 = arith.constant 0 : i32
    return %arg0, %c0_i32 : i32, i32
  }
}

</mosaic_0001>

<llo_original>
// kernel: tpu_custom_call.1
$region0: #{tpu_custom_call.1}
  #allocation0 [shape = 'u32[]', space=smem, size = 0x4, offset = 0x4, fixed_abs, tag = 'smem constant byte address 0x4 - core index']
  #allocation1 [shape = 'u32[72,128]{1,0:T(1,128)}', space=vmem, size = 0x9000, scoped, tag = 'internal scratch']
  %s0 = inlined_call_operand.vmem [shape: f32[11,4], index: 0, kind: input, shape index: {}]
  %s1 = inlined_call_operand.vmem [shape: f32[346,11], index: 1, kind: input, shape index: {}]
  %s2 = inlined_call_operand.vmem [shape: f32[346,4], index: 2, kind: output, shape index: {}]
  %s3 = sld [smem:[#allocation0]]
  $region18: #{tpu_custom_call.1} parent=0
    _
  %s5 = ssub.s32 1, %s3
  %s6 = scalar_select 0, %s5, %s3
  // Predicated region
  $region2: #{tpu_custom_call.1} parent=0 // pred_check
    _
  $region3: #{tpu_custom_call.1} parent=0 // pred_check_branch
    %8 = sbr.rel (0) target = $region5
  $region4: #{tpu_custom_call.1} parent=0 // pred_region
    _
  $region5: #{tpu_custom_call.1} parent=0 // pred_fallthru
    _
  // Predicated region
  $region6: #{tpu_custom_call.1} parent=0 // pred_check
    _
  $region7: #{tpu_custom_call.1} parent=0 // pred_check_branch
    %10 = sbr.rel (0) target = $region9
  $region8: #{tpu_custom_call.1} parent=0 // pred_region
    _
  $region9: #{tpu_custom_call.1} parent=0 // pred_fallthru
    _
  %v11 = vld [vmem:[%s1] sm:$0xff]
  %v12 = vld [vmem:[%s1 + $0x8] sm:$0xff]
  %v13 = vld [vmem:[%s1 + $0x10] sm:$0xff]
  %v14 = vld [vmem:[%s1 + $0x18] sm:$0xff]
  %v15 = vld [vmem:[%s1 + $0x20] sm:$0xff]
  %v16 = vld [vmem:[%s1 + $0x28] sm:$0xff]
  %v17 = vld [vmem:[%s1 + $0x30] sm:$0xff]
  %v18 = vld [vmem:[%s1 + $0x38] sm:$0xff]
  %v19 = vld [vmem:[%s1 + $0x40] sm:$0xff]
  %v20 = vld [vmem:[%s1 + $0x48] sm:$0xff]
  %v21 = vld [vmem:[%s1 + $0x50] sm:$0xff]
  %v22 = vld [vmem:[%s1 + $0x58] sm:$0xff]
  %v23 = vld [vmem:[%s1 + $0x60] sm:$0xff]
  %v24 = vld [vmem:[%s1 + $0x68] sm:$0xff]
  %v25 = vld [vmem:[%s1 + $0x70] sm:$0xff]
  %v26 = vld [vmem:[%s1 + $0x78] sm:$0xff]
  %v27 = vld [vmem:[%s1 + $0x80] sm:$0xff]
  %v28 = vld [vmem:[%s1 + $0x88] sm:$0xff]
  %v29 = vld [vmem:[%s1 + $0x90] sm:$0xff]
  %v30 = vld [vmem:[%s1 + $0x98] sm:$0xff]
  %v31 = vld [vmem:[%s1 + $0xa0] sm:$0xff]
  %v32 = vld [vmem:[%s1 + $0xa8] sm:$0xff]
  %v33 = vld [vmem:[%s1 + $0xb0] sm:$0xff]
  %v34 = vld [vmem:[%s1 + $0xb8] sm:$0xff]
  %v35 = vld [vmem:[%s1 + $0xc0] sm:$0xff]
  %v36 = vld [vmem:[%s1 + $0xc8] sm:$0xff]
  %v37 = vld [vmem:[%s1 + $0xd0] sm:$0xff]
  %v38 = vld [vmem:[%s1 + $0xd8] sm:$0xff]
  %v39 = vld [vmem:[%s1 + $0xe0] sm:$0xff]
  %v40 = vld [vmem:[%s1 + $0xe8] sm:$0xff]
  %v41 = vld [vmem:[%s1 + $0xf0] sm:$0xff]
  %v42 = vld [vmem:[%s1 + $0xf8] sm:$0xff]
  %v43 = vld [vmem:[%s1 + $0x100] sm:$0xff]
  %v44 = vld [vmem:[%s1 + $0x108] sm:$0xff]
  %v45 = vld [vmem:[%s1 + $0x110] sm:$0xff]
  %v46 = vld [vmem:[%s1 + $0x118] sm:$0xff]
  %v47 = vld [vmem:[%s1 + $0x120] sm:$0xff]
  %v48 = vld [vmem:[%s1 + $0x128] sm:$0xff]
  %v49 = vld [vmem:[%s1 + $0x130] sm:$0xff]
  %v50 = vld [vmem:[%s1 + $0x138] sm:$0xff]
  %v51 = vld [vmem:[%s1 + $0x140] sm:$0xff]
  %v52 = vld [vmem:[%s1 + $0x148] sm:$0xff]
  %v53 = vld [vmem:[%s1 + $0x150] sm:$0xff]
  %v54 = vld [vmem:[%s1 + $0x158] sm:$0x3]
  %v55 = vlaneseq
  %v56 = vand.u32 %v55, 127
  %vm57 = vcmask 89088
  %v58 = vsel %vm57, %v11, -inf
  %59 = vmax.xlane.f32.xlu0 %v58
  %v60 = vpop.xlane.xlu0 %59
  %v61 = vsel %vm57, %v12, -inf
  %62 = vmax.xlane.f32.xlu0 %v61
  %v63 = vpop.xlane.xlu0 %62
  %v64 = vsel %vm57, %v13, -inf
  %65 = vmax.xlane.f32.xlu0 %v64
  %v66 = vpop.xlane.xlu0 %65
  %v67 = vsel %vm57, %v14, -inf
  %68 = vmax.xlane.f32.xlu0 %v67
  %v69 = vpop.xlane.xlu0 %68
  %v70 = vsel %vm57, %v15, -inf
  %71 = vmax.xlane.f32.xlu0 %v70
  %v72 = vpop.xlane.xlu0 %71
  %v73 = vsel %vm57, %v16, -inf
  %74 = vmax.xlane.f32.xlu0 %v73
  %v75 = vpop.xlane.xlu0 %74
  %v76 = vsel %vm57, %v17, -inf
  %77 = vmax.xlane.f32.xlu0 %v76
  %v78 = vpop.xlane.xlu0 %77
  %v79 = vsel %vm57, %v18, -inf
  %80 = vmax.xlane.f32.xlu0 %v79
  %v81 = vpop.xlane.xlu0 %80
  %v82 = vsel %vm57, %v19, -inf
  %83 = vmax.xlane.f32.xlu0 %v82
  %v84 = vpop.xlane.xlu0 %83
  %v85 = vsel %vm57, %v20, -inf
  %86 = vmax.xlane.f32.xlu0 %v85
  %v87 = vpop.xlane.xlu0 %86
  %v88 = vsel %vm57, %v21, -inf
  %89 = vmax.xlane.f32.xlu0 %v88
  %v90 = vpop.xlane.xlu0 %89
  %v91 = vsel %vm57, %v22, -inf
  %92 = vmax.xlane.f32.xlu0 %v91
  %v93 = vpop.xlane.xlu0 %92
  %v94 = vsel %vm57, %v23, -inf
  %95 = vmax.xlane.f32.xlu0 %v94
  %v96 = vpop.xlane.xlu0 %95
  %v97 = vsel %vm57, %v24, -inf
  %98 = vmax.xlane.f32.xlu0 %v97
  %v99 = vpop.xlane.xlu0 %98
  %v100 = vsel %vm57, %v25, -inf
  %101 = vmax.xlane.f32.xlu0 %v100
  %v102 = vpop.xlane.xlu0 %101
  %v103 = vsel %vm57, %v26, -inf
  %104 = vmax.xlane.f32.xlu0 %v103
  %v105 = vpop.xlane.xlu0 %104
  %v106 = vsel %vm57, %v27, -inf
  %107 = vmax.xlane.f32.xlu0 %v106
  %v108 = vpop.xlane.xlu0 %107
  %v109 = vsel %vm57, %v28, -inf
  %110 = vmax.xlane.f32.xlu0 %v109
  %v111 = vpop.xlane.xlu0 %110
  %v112 = vsel %vm57, %v29, -inf
  %113 = vmax.xlane.f32.xlu0 %v112
  %v114 = vpop.xlane.xlu0 %113
  %v115 = vsel %vm57, %v30, -inf
  %116 = vmax.xlane.f32.xlu0 %v115
  %v117 = vpop.xlane.xlu0 %116
  %v118 = vsel %vm57, %v31, -inf
  %119 = vmax.xlane.f32.xlu0 %v118
  %v120 = vpop.xlane.xlu0 %119
  %v121 = vsel %vm57, %v32, -inf
  %122 = vmax.xlane.f32.xlu0 %v121
  %v123 = vpop.xlane.xlu0 %122
  %v124 = vsel %vm57, %v33, -inf
  %125 = vmax.xlane.f32.xlu0 %v124
  %v126 = vpop.xlane.xlu0 %125
  %v127 = vsel %vm57, %v34, -inf
  %128 = vmax.xlane.f32.xlu0 %v127
  %v129 = vpop.xlane.xlu0 %128
  %v130 = vsel %vm57, %v35, -inf
  %131 = vmax.xlane.f32.xlu0 %v130
  %v132 = vpop.xlane.xlu0 %131
  %v133 = vsel %vm57, %v36, -inf
  %134 = vmax.xlane.f32.xlu0 %v133
  %v135 = vpop.xlane.xlu0 %134
  %v136 = vsel %vm57, %v37, -inf
  %137 = vmax.xlane.f32.xlu0 %v136
  %v138 = vpop.xlane.xlu0 %137
  %v139 = vsel %vm57, %v38, -inf
  %140 = vmax.xlane.f32.xlu0 %v139
  %v141 = vpop.xlane.xlu0 %140
  %v142 = vsel %vm57, %v39, -inf
  %143 = vmax.xlane.f32.xlu0 %v142
  %v144 = vpop.xlane.xlu0 %143
  %v145 = vsel %vm57, %v40, -inf
  %146 = vmax.xlane.f32.xlu0 %v145
  %v147 = vpop.xlane.xlu0 %146
  %v148 = vsel %vm57, %v41, -inf
  %149 = vmax.xlane.f32.xlu0 %v148
  %v150 = vpop.xlane.xlu0 %149
  %v151 = vsel %vm57, %v42, -inf
  %152 = vmax.xlane.f32.xlu0 %v151
  %v153 = vpop.xlane.xlu0 %152
  %v154 = vsel %vm57, %v43, -inf
  %155 = vmax.xlane.f32.xlu0 %v154
  %v156 = vpop.xlane.xlu0 %155
  %v157 = vsel %vm57, %v44, -inf
  %158 = vmax.xlane.f32.xlu0 %v157
  %v159 = vpop.xlane.xlu0 %158
  %v160 = vsel %vm57, %v45, -inf
  %161 = vmax.xlane.f32.xlu0 %v160
  %v162 = vpop.xlane.xlu0 %161
  %v163 = vsel %vm57, %v46, -inf
  %164 = vmax.xlane.f32.xlu0 %v163
  %v165 = vpop.xlane.xlu0 %164
  %v166 = vsel %vm57, %v47, -inf
  %167 = vmax.xlane.f32.xlu0 %v166
  %v168 = vpop.xlane.xlu0 %167
  %v169 = vsel %vm57, %v48, -inf
  %170 = vmax.xlane.f32.xlu0 %v169
  %v171 = vpop.xlane.xlu0 %170
  %v172 = vsel %vm57, %v49, -inf
  %173 = vmax.xlane.f32.xlu0 %v172
  %v174 = vpop.xlane.xlu0 %173
  %v175 = vsel %vm57, %v50, -inf
  %176 = vmax.xlane.f32.xlu0 %v175
  %v177 = vpop.xlane.xlu0 %176
  %v178 = vsel %vm57, %v51, -inf
  %179 = vmax.xlane.f32.xlu0 %v178
  %v180 = vpop.xlane.xlu0 %179
  %v181 = vsel %vm57, %v52, -inf
  %182 = vmax.xlane.f32.xlu0 %v181
  %v183 = vpop.xlane.xlu0 %182
  %v184 = vsel %vm57, %v53, -inf
  %185 = vmax.xlane.f32.xlu0 %v184
  %v186 = vpop.xlane.xlu0 %185
  %vm187 = vcmask 82944
  %v188 = vsel %vm187, %v54, -inf
  %189 = vmax.xlane.f32.xlu0 %v188
  %v190 = vpop.xlane.xlu0 %189
  %vm191 = vcmp.eq.f32.partialorder %v11, %v60
  %vm192 = vcmp.eq.f32.partialorder %v12, %v63
  %vm193 = vcmp.eq.f32.partialorder %v13, %v66
  %vm194 = vcmp.eq.f32.partialorder %v14, %v69
  %vm195 = vcmp.eq.f32.partialorder %v15, %v72
  %vm196 = vcmp.eq.f32.partialorder %v16, %v75
  %vm197 = vcmp.eq.f32.partialorder %v17, %v78
  %vm198 = vcmp.eq.f32.partialorder %v18, %v81
  %vm199 = vcmp.eq.f32.partialorder %v19, %v84
  %vm200 = vcmp.eq.f32.partialorder %v20, %v87
  %vm201 = vcmp.eq.f32.partialorder %v21, %v90
  %vm202 = vcmp.eq.f32.partialorder %v22, %v93
  %vm203 = vcmp.eq.f32.partialorder %v23, %v96
  %vm204 = vcmp.eq.f32.partialorder %v24, %v99
  %vm205 = vcmp.eq.f32.partialorder %v25, %v102
  %vm206 = vcmp.eq.f32.partialorder %v26, %v105
  %vm207 = vcmp.eq.f32.partialorder %v27, %v108
  %vm208 = vcmp.eq.f32.partialorder %v28, %v111
  %vm209 = vcmp.eq.f32.partialorder %v29, %v114
  %vm210 = vcmp.eq.f32.partialorder %v30, %v117
  %vm211 = vcmp.eq.f32.partialorder %v31, %v120
  %vm212 = vcmp.eq.f32.partialorder %v32, %v123
  %vm213 = vcmp.eq.f32.partialorder %v33, %v126
  %vm214 = vcmp.eq.f32.partialorder %v34, %v129
  %vm215 = vcmp.eq.f32.partialorder %v35, %v132
  %vm216 = vcmp.eq.f32.partialorder %v36, %v135
  %vm217 = vcmp.eq.f32.partialorder %v37, %v138
  %vm218 = vcmp.eq.f32.partialorder %v38, %v141
  %vm219 = vcmp.eq.f32.partialorder %v39, %v144
  %vm220 = vcmp.eq.f32.partialorder %v40, %v147
  %vm221 = vcmp.eq.f32.partialorder %v41, %v150
  %vm222 = vcmp.eq.f32.partialorder %v42, %v153
  %vm223 = vcmp.eq.f32.partialorder %v43, %v156
  %vm224 = vcmp.eq.f32.partialorder %v44, %v159
  %vm225 = vcmp.eq.f32.partialorder %v45, %v162
  %vm226 = vcmp.eq.f32.partialorder %v46, %v165
  %vm227 = vcmp.eq.f32.partialorder %v47, %v168
  %vm228 = vcmp.eq.f32.partialorder %v48, %v171
  %vm229 = vcmp.eq.f32.partialorder %v49, %v174
  %vm230 = vcmp.eq.f32.partialorder %v50, %v177
  %vm231 = vcmp.eq.f32.partialorder %v51, %v180
  %vm232 = vcmp.eq.f32.partialorder %v52, %v183
  %vm233 = vcmp.eq.f32.partialorder %v53, %v186
  %vm234 = vcmp.eq.f32.partialorder %v54, %v190
  %v235 = vsel %vm191, %v56, 11
  %v236 = vsel %vm192, %v56, 11
  %v237 = vsel %vm193, %v56, 11
  %v238 = vsel %vm194, %v56, 11
  %v239 = vsel %vm195, %v56, 11
  %v240 = vsel %vm196, %v56, 11
  %v241 = vsel %vm197, %v56, 11
  %v242 = vsel %vm198, %v56, 11
  %v243 = vsel %vm199, %v56, 11
  %v244 = vsel %vm200, %v56, 11
  %v245 = vsel %vm201, %v56, 11
  %v246 = vsel %vm202, %v56, 11
  %v247 = vsel %vm203, %v56, 11
  %v248 = vsel %vm204, %v56, 11
  %v249 = vsel %vm205, %v56, 11
  %v250 = vsel %vm206, %v56, 11
  %v251 = vsel %vm207, %v56, 11
  %v252 = vsel %vm208, %v56, 11
  %v253 = vsel %vm209, %v56, 11
  %v254 = vsel %vm210, %v56, 11
  %v255 = vsel %vm211, %v56, 11
  %v256 = vsel %vm212, %v56, 11
  %v257 = vsel %vm213, %v56, 11
  %v258 = vsel %vm214, %v56, 11
  %v259 = vsel %vm215, %v56, 11
  %v260 = vsel %vm216, %v56, 11
  %v261 = vsel %vm217, %v56, 11
  %v262 = vsel %vm218, %v56, 11
  %v263 = vsel %vm219, %v56, 11
  %v264 = vsel %vm220, %v56, 11
  %v265 = vsel %vm221, %v56, 11
  %v266 = vsel %vm222, %v56, 11
  %v267 = vsel %vm223, %v56, 11
  %v268 = vsel %vm224, %v56, 11
  %v269 = vsel %vm225, %v56, 11
  %v270 = vsel %vm226, %v56, 11
  %v271 = vsel %vm227, %v56, 11
  %v272 = vsel %vm228, %v56, 11
  %v273 = vsel %vm229, %v56, 11
  %v274 = vsel %vm230, %v56, 11
  %v275 = vsel %vm231, %v56, 11
  %v276 = vsel %vm232, %v56, 11
  %v277 = vsel %vm233, %v56, 11
  %v278 = vsel %vm234, %v56, 11
  %v279 = vsel %vm57, %v235, 2147483647
  %v280 = vand.u32 %v279, 65535
  %v281 = vshra.s32 %v279, 16
  %v282 = vcvt.s32.f32 %v280
  %v283 = vcvt.s32.f32 %v281
  %284 = vmin.xlane.f32.xlu0 %v283
  %v285 = vpop.xlane.xlu0 %284
  %vm286 = vcmp.eq.f32.partialorder %v283, %v285
  %v287 = vsel %vm286, %v282, inf
  %288 = vmin.xlane.f32.xlu0 %v287
  %v289 = vpop.xlane.xlu0 %288
  %v290 = vcvt.f32.s32 %v289
  %v291 = vcvt.f32.s32 %v285
  %v292 = vshll.u32 %v291, 16
  %v293 = vadd.s32 %v292, %v290
  %v294 = vsel %vm57, %v236, 2147483647
  %v295 = vand.u32 %v294, 65535
  %v296 = vshra.s32 %v294, 16
  %v297 = vcvt.s32.f32 %v295
  %v298 = vcvt.s32.f32 %v296
  %299 = vmin.xlane.f32.xlu0 %v298
  %v300 = vpop.xlane.xlu0 %299
  %vm301 = vcmp.eq.f32.partialorder %v298, %v300
  %v302 = vsel %vm301, %v297, inf
  %303 = vmin.xlane.f32.xlu0 %v302
  %v304 = vpop.xlane.xlu0 %303
  %v305 = vcvt.f32.s32 %v304
  %v306 = vcvt.f32.s32 %v300
  %v307 = vshll.u32 %v306, 16
  %v308 = vadd.s32 %v307, %v305
  %v309 = vsel %vm57, %v237, 2147483647
  %v310 = vand.u32 %v309, 65535
  %v311 = vshra.s32 %v309, 16
  %v312 = vcvt.s32.f32 %v310
  %v313 = vcvt.s32.f32 %v311
  %314 = vmin.xlane.f32.xlu0 %v313
  %v315 = vpop.xlane.xlu0 %314
  %vm316 = vcmp.eq.f32.partialorder %v313, %v315
  %v317 = vsel %vm316, %v312, inf
  %318 = vmin.xlane.f32.xlu0 %v317
  %v319 = vpop.xlane.xlu0 %318
  %v320 = vcvt.f32.s32 %v319
  %v321 = vcvt.f32.s32 %v315
  %v322 = vshll.u32 %v321, 16
  %v323 = vadd.s32 %v322, %v320
  %v324 = vsel %vm57, %v238, 2147483647
  %v325 = vand.u32 %v324, 65535
  %v326 = vshra.s32 %v324, 16
  %v327 = vcvt.s32.f32 %v325
  %v328 = vcvt.s32.f32 %v326
  %329 = vmin.xlane.f32.xlu0 %v328
  %v330 = vpop.xlane.xlu0 %329
  %vm331 = vcmp.eq.f32.partialorder %v328, %v330
  %v332 = vsel %vm331, %v327, inf
  %333 = vmin.xlane.f32.xlu0 %v332
  %v334 = vpop.xlane.xlu0 %333
  %v335 = vcvt.f32.s32 %v334
  %v336 = vcvt.f32.s32 %v330
  %v337 = vshll.u32 %v336, 16
  %v338 = vadd.s32 %v337, %v335
  %v339 = vsel %vm57, %v239, 2147483647
  %v340 = vand.u32 %v339, 65535
  %v341 = vshra.s32 %v339, 16
  %v342 = vcvt.s32.f32 %v340
  %v343 = vcvt.s32.f32 %v341
  %344 = vmin.xlane.f32.xlu0 %v343
  %v345 = vpop.xlane.xlu0 %344
  %vm346 = vcmp.eq.f32.partialorder %v343, %v345
  %v347 = vsel %vm346, %v342, inf
  %348 = vmin.xlane.f32.xlu0 %v347
  %v349 = vpop.xlane.xlu0 %348
  %v350 = vcvt.f32.s32 %v349
  %v351 = vcvt.f32.s32 %v345
  %v352 = vshll.u32 %v351, 16
  %v353 = vadd.s32 %v352, %v350
  %v354 = vsel %vm57, %v240, 2147483647
  %v355 = vand.u32 %v354, 65535
  %v356 = vshra.s32 %v354, 16
  %v357 = vcvt.s32.f32 %v355
  %v358 = vcvt.s32.f32 %v356
  %359 = vmin.xlane.f32.xlu0 %v358
  %v360 = vpop.xlane.xlu0 %359
  %vm361 = vcmp.eq.f32.partialorder %v358, %v360
  %v362 = vsel %vm361, %v357, inf
  %363 = vmin.xlane.f32.xlu0 %v362
  %v364 = vpop.xlane.xlu0 %363
  %v365 = vcvt.f32.s32 %v364
  %v366 = vcvt.f32.s32 %v360
  %v367 = vshll.u32 %v366, 16
  %v368 = vadd.s32 %v367, %v365
  %v369 = vsel %vm57, %v241, 2147483647
  %v370 = vand.u32 %v369, 65535
  %v371 = vshra.s32 %v369, 16
  %v372 = vcvt.s32.f32 %v370
  %v373 = vcvt.s32.f32 %v371
  %374 = vmin.xlane.f32.xlu0 %v373
  %v375 = vpop.xlane.xlu0 %374
  %vm376 = vcmp.eq.f32.partialorder %v373, %v375
  %v377 = vsel %vm376, %v372, inf
  %378 = vmin.xlane.f32.xlu0 %v377
  %v379 = vpop.xlane.xlu0 %378
  %v380 = vcvt.f32.s32 %v379
  %v381 = vcvt.f32.s32 %v375
  %v382 = vshll.u32 %v381, 16
  %v383 = vadd.s32 %v382, %v380
  %v384 = vsel %vm57, %v242, 2147483647
  %v385 = vand.u32 %v384, 65535
  %v386 = vshra.s32 %v384, 16
  %v387 = vcvt.s32.f32 %v385
  %v388 = vcvt.s32.f32 %v386
  %389 = vmin.xlane.f32.xlu0 %v388
  %v390 = vpop.xlane.xlu0 %389
  %vm391 = vcmp.eq.f32.partialorder %v388, %v390
  %v392 = vsel %vm391, %v387, inf
  %393 = vmin.xlane.f32.xlu0 %v392
  %v394 = vpop.xlane.xlu0 %393
  %v395 = vcvt.f32.s32 %v394
  %v396 = vcvt.f32.s32 %v390
  %v397 = vshll.u32 %v396, 16
  %v398 = vadd.s32 %v397, %v395
  %v399 = vsel %vm57, %v243, 2147483647
  %v400 = vand.u32 %v399, 65535
  %v401 = vshra.s32 %v399, 16
  %v402 = vcvt.s32.f32 %v400
  %v403 = vcvt.s32.f32 %v401
  %404 = vmin.xlane.f32.xlu0 %v403
  %v405 = vpop.xlane.xlu0 %404
  %vm406 = vcmp.eq.f32.partialorder %v403, %v405
  %v407 = vsel %vm406, %v402, inf
  %408 = vmin.xlane.f32.xlu0 %v407
  %v409 = vpop.xlane.xlu0 %408
  %v410 = vcvt.f32.s32 %v409
  %v411 = vcvt.f32.s32 %v405
  %v412 = vshll.u32 %v411, 16
  %v413 = vadd.s32 %v412, %v410
  %v414 = vsel %vm57, %v244, 2147483647
  %v415 = vand.u32 %v414, 65535
  %v416 = vshra.s32 %v414, 16
  %v417 = vcvt.s32.f32 %v415
  %v418 = vcvt.s32.f32 %v416
  %419 = vmin.xlane.f32.xlu0 %v418
  %v420 = vpop.xlane.xlu0 %419
  %vm421 = vcmp.eq.f32.partialorder %v418, %v420
  %v422 = vsel %vm421, %v417, inf
  %423 = vmin.xlane.f32.xlu0 %v422
  %v424 = vpop.xlane.xlu0 %423
  %v425 = vcvt.f32.s32 %v424
  %v426 = vcvt.f32.s32 %v420
  %v427 = vshll.u32 %v426, 16
  %v428 = vadd.s32 %v427, %v425
  %v429 = vsel %vm57, %v245, 2147483647
  %v430 = vand.u32 %v429, 65535
  %v431 = vshra.s32 %v429, 16
  %v432 = vcvt.s32.f32 %v430
  %v433 = vcvt.s32.f32 %v431
  %434 = vmin.xlane.f32.xlu0 %v433
  %v435 = vpop.xlane.xlu0 %434
  %vm436 = vcmp.eq.f32.partialorder %v433, %v435
  %v437 = vsel %vm436, %v432, inf
  %438 = vmin.xlane.f32.xlu0 %v437
  %v439 = vpop.xlane.xlu0 %438
  %v440 = vcvt.f32.s32 %v439
  %v441 = vcvt.f32.s32 %v435
  %v442 = vshll.u32 %v441, 16
  %v443 = vadd.s32 %v442, %v440
  %v444 = vsel %vm57, %v246, 2147483647
  %v445 = vand.u32 %v444, 65535
  %v446 = vshra.s32 %v444, 16
  %v447 = vcvt.s32.f32 %v445
  %v448 = vcvt.s32.f32 %v446
  %449 = vmin.xlane.f32.xlu0 %v448
  %v450 = vpop.xlane.xlu0 %449
  %vm451 = vcmp.eq.f32.partialorder %v448, %v450
  %v452 = vsel %vm451, %v447, inf
  %453 = vmin.xlane.f32.xlu0 %v452
  %v454 = vpop.xlane.xlu0 %453
  %v455 = vcvt.f32.s32 %v454
  %v456 = vcvt.f32.s32 %v450
  %v457 = vshll.u32 %v456, 16
  %v458 = vadd.s32 %v457, %v455
  %v459 = vsel %vm57, %v247, 2147483647
  %v460 = vand.u32 %v459, 65535
  %v461 = vshra.s32 %v459, 16
  %v462 = vcvt.s32.f32 %v460
  %v463 = vcvt.s32.f32 %v461
  %464 = vmin.xlane.f32.xlu0 %v463
  %v465 = vpop.xlane.xlu0 %464
  %vm466 = vcmp.eq.f32.partialorder %v463, %v465
  %v467 = vsel %vm466, %v462, inf
  %468 = vmin.xlane.f32.xlu0 %v467
  %v469 = vpop.xlane.xlu0 %468
  %v470 = vcvt.f32.s32 %v469
  %v471 = vcvt.f32.s32 %v465
  %v472 = vshll.u32 %v471, 16
  %v473 = vadd.s32 %v472, %v470
  %v474 = vsel %vm57, %v248, 2147483647
  %v475 = vand.u32 %v474, 65535
  %v476 = vshra.s32 %v474, 16
  %v477 = vcvt.s32.f32 %v475
  %v478 = vcvt.s32.f32 %v476
  %479 = vmin.xlane.f32.xlu0 %v478
  %v480 = vpop.xlane.xlu0 %479
  %vm481 = vcmp.eq.f32.partialorder %v478, %v480
  %v482 = vsel %vm481, %v477, inf
  %483 = vmin.xlane.f32.xlu0 %v482
  %v484 = vpop.xlane.xlu0 %483
  %v485 = vcvt.f32.s32 %v484
  %v486 = vcvt.f32.s32 %v480
  %v487 = vshll.u32 %v486, 16
  %v488 = vadd.s32 %v487, %v485
  %v489 = vsel %vm57, %v249, 2147483647
  %v490 = vand.u32 %v489, 65535
  %v491 = vshra.s32 %v489, 16
  %v492 = vcvt.s32.f32 %v490
  %v493 = vcvt.s32.f32 %v491
  %494 = vmin.xlane.f32.xlu0 %v493
  %v495 = vpop.xlane.xlu0 %494
  %vm496 = vcmp.eq.f32.partialorder %v493, %v495
  %v497 = vsel %vm496, %v492, inf
  %498 = vmin.xlane.f32.xlu0 %v497
  %v499 = vpop.xlane.xlu0 %498
  %v500 = vcvt.f32.s32 %v499
  %v501 = vcvt.f32.s32 %v495
  %v502 = vshll.u32 %v501, 16
  %v503 = vadd.s32 %v502, %v500
  %v504 = vsel %vm57, %v250, 2147483647
  %v505 = vand.u32 %v504, 65535
  %v506 = vshra.s32 %v504, 16
  %v507 = vcvt.s32.f32 %v505
  %v508 = vcvt.s32.f32 %v506
  %509 = vmin.xlane.f32.xlu0 %v508
  %v510 = vpop.xlane.xlu0 %509
  %vm511 = vcmp.eq.f32.partialorder %v508, %v510
  %v512 = vsel %vm511, %v507, inf
  %513 = vmin.xlane.f32.xlu0 %v512
  %v514 = vpop.xlane.xlu0 %513
  %v515 = vcvt.f32.s32 %v514
  %v516 = vcvt.f32.s32 %v510
  %v517 = vshll.u32 %v516, 16
  %v518 = vadd.s32 %v517, %v515
  %v519 = vsel %vm57, %v251, 2147483647
  %v520 = vand.u32 %v519, 65535
  %v521 = vshra.s32 %v519, 16
  %v522 = vcvt.s32.f32 %v520
  %v523 = vcvt.s32.f32 %v521
  %524 = vmin.xlane.f32.xlu0 %v523
  %v525 = vpop.xlane.xlu0 %524
  %vm526 = vcmp.eq.f32.partialorder %v523, %v525
  %v527 = vsel %vm526, %v522, inf
  %528 = vmin.xlane.f32.xlu0 %v527
  %v529 = vpop.xlane.xlu0 %528
  %v530 = vcvt.f32.s32 %v529
  %v531 = vcvt.f32.s32 %v525
  %v532 = vshll.u32 %v531, 16
  %v533 = vadd.s32 %v532, %v530
  %v534 = vsel %vm57, %v252, 2147483647
  %v535 = vand.u32 %v534, 65535
  %v536 = vshra.s32 %v534, 16
  %v537 = vcvt.s32.f32 %v535
  %v538 = vcvt.s32.f32 %v536
  %539 = vmin.xlane.f32.xlu0 %v538
  %v540 = vpop.xlane.xlu0 %539
  %vm541 = vcmp.eq.f32.partialorder %v538, %v540
  %v542 = vsel %vm541, %v537, inf
  %543 = vmin.xlane.f32.xlu0 %v542
  %v544 = vpop.xlane.xlu0 %543
  %v545 = vcvt.f32.s32 %v544
  %v546 = vcvt.f32.s32 %v540
  %v547 = vshll.u32 %v546, 16
  %v548 = vadd.s32 %v547, %v545
  %v549 = vsel %vm57, %v253, 2147483647
  %v550 = vand.u32 %v549, 65535
  %v551 = vshra.s32 %v549, 16
  %v552 = vcvt.s32.f32 %v550
  %v553 = vcvt.s32.f32 %v551
  %554 = vmin.xlane.f32.xlu0 %v553
  %v555 = vpop.xlane.xlu0 %554
  %vm556 = vcmp.eq.f32.partialorder %v553, %v555
  %v557 = vsel %vm556, %v552, inf
  %558 = vmin.xlane.f32.xlu0 %v557
  %v559 = vpop.xlane.xlu0 %558
  %v560 = vcvt.f32.s32 %v559
  %v561 = vcvt.f32.s32 %v555
  %v562 = vshll.u32 %v561, 16
  %v563 = vadd.s32 %v562, %v560
  %v564 = vsel %vm57, %v254, 2147483647
  %v565 = vand.u32 %v564, 65535
  %v566 = vshra.s32 %v564, 16
  %v567 = vcvt.s32.f32 %v565
  %v568 = vcvt.s32.f32 %v566
  %569 = vmin.xlane.f32.xlu0 %v568
  %v570 = vpop.xlane.xlu0 %569
  %vm571 = vcmp.eq.f32.partialorder %v568, %v570
  %v572 = vsel %vm571, %v567, inf
  %573 = vmin.xlane.f32.xlu0 %v572
  %v574 = vpop.xlane.xlu0 %573
  %v575 = vcvt.f32.s32 %v574
  %v576 = vcvt.f32.s32 %v570
  %v577 = vshll.u32 %v576, 16
  %v578 = vadd.s32 %v577, %v575
  %v579 = vsel %vm57, %v255, 2147483647
  %v580 = vand.u32 %v579, 65535
  %v581 = vshra.s32 %v579, 16
  %v582 = vcvt.s32.f32 %v580
  %v583 = vcvt.s32.f32 %v581
  %584 = vmin.xlane.f32.xlu0 %v583
  %v585 = vpop.xlane.xlu0 %584
  %vm586 = vcmp.eq.f32.partialorder %v583, %v585
  %v587 = vsel %vm586, %v582, inf
  %588 = vmin.xlane.f32.xlu0 %v587
  %v589 = vpop.xlane.xlu0 %588
  %v590 = vcvt.f32.s32 %v589
  %v591 = vcvt.f32.s32 %v585
  %v592 = vshll.u32 %v591, 16
  %v593 = vadd.s32 %v592, %v590
  %v594 = vsel %vm57, %v256, 2147483647
  %v595 = vand.u32 %v594, 65535
  %v596 = vshra.s32 %v594, 16
  %v597 = vcvt.s32.f32 %v595
  %v598 = vcvt.s32.f32 %v596
  %599 = vmin.xlane.f32.xlu0 %v598
  %v600 = vpop.xlane.xlu0 %599
  %vm601 = vcmp.eq.f32.partialorder %v598, %v600
  %v602 = vsel %vm601, %v597, inf
  %603 = vmin.xlane.f32.xlu0 %v602
  %v604 = vpop.xlane.xlu0 %603
  %v605 = vcvt.f32.s32 %v604
  %v606 = vcvt.f32.s32 %v600
  %v607 = vshll.u32 %v606, 16
  %v608 = vadd.s32 %v607, %v605
  %v609 = vsel %vm57, %v257, 2147483647
  %v610 = vand.u32 %v609, 65535
  %v611 = vshra.s32 %v609, 16
  %v612 = vcvt.s32.f32 %v610
  %v613 = vcvt.s32.f32 %v611
  %614 = vmin.xlane.f32.xlu0 %v613
  %v615 = vpop.xlane.xlu0 %614
  %vm616 = vcmp.eq.f32.partialorder %v613, %v615
  %v617 = vsel %vm616, %v612, inf
  %618 = vmin.xlane.f32.xlu0 %v617
  %v619 = vpop.xlane.xlu0 %618
  %v620 = vcvt.f32.s32 %v619
  %v621 = vcvt.f32.s32 %v615
  %v622 = vshll.u32 %v621, 16
  %v623 = vadd.s32 %v622, %v620
  %v624 = vsel %vm57, %v258, 2147483647
  %v625 = vand.u32 %v624, 65535
  %v626 = vshra.s32 %v624, 16
  %v627 = vcvt.s32.f32 %v625
  %v628 = vcvt.s32.f32 %v626
  %629 = vmin.xlane.f32.xlu0 %v628
  %v630 = vpop.xlane.xlu0 %629
  %vm631 = vcmp.eq.f32.partialorder %v628, %v630
  %v632 = vsel %vm631, %v627, inf
  %633 = vmin.xlane.f32.xlu0 %v632
  %v634 = vpop.xlane.xlu0 %633
  %v635 = vcvt.f32.s32 %v634
  %v636 = vcvt.f32.s32 %v630
  %v637 = vshll.u32 %v636, 16
  %v638 = vadd.s32 %v637, %v635
  %v639 = vsel %vm57, %v259, 2147483647
  %v640 = vand.u32 %v639, 65535
  %v641 = vshra.s32 %v639, 16
  %v642 = vcvt.s32.f32 %v640
  %v643 = vcvt.s32.f32 %v641
  %644 = vmin.xlane.f32.xlu0 %v643
  %v645 = vpop.xlane.xlu0 %644
  %vm646 = vcmp.eq.f32.partialorder %v643, %v645
  %v647 = vsel %vm646, %v642, inf
  %648 = vmin.xlane.f32.xlu0 %v647
  %v649 = vpop.xlane.xlu0 %648
  %v650 = vcvt.f32.s32 %v649
  %v651 = vcvt.f32.s32 %v645
  %v652 = vshll.u32 %v651, 16
  %v653 = vadd.s32 %v652, %v650
  %v654 = vsel %vm57, %v260, 2147483647
  %v655 = vand.u32 %v654, 65535
  %v656 = vshra.s32 %v654, 16
  %v657 = vcvt.s32.f32 %v655
  %v658 = vcvt.s32.f32 %v656
  %659 = vmin.xlane.f32.xlu0 %v658
  %v660 = vpop.xlane.xlu0 %659
  %vm661 = vcmp.eq.f32.partialorder %v658, %v660
  %v662 = vsel %vm661, %v657, inf
  %663 = vmin.xlane.f32.xlu0 %v662
  %v664 = vpop.xlane.xlu0 %663
  %v665 = vcvt.f32.s32 %v664
  %v666 = vcvt.f32.s32 %v660
  %v667 = vshll.u32 %v666, 16
  %v668 = vadd.s32 %v667, %v665
  %v669 = vsel %vm57, %v261, 2147483647
  %v670 = vand.u32 %v669, 65535
  %v671 = vshra.s32 %v669, 16
  %v672 = vcvt.s32.f32 %v670
  %v673 = vcvt.s32.f32 %v671
  %674 = vmin.xlane.f32.xlu0 %v673
  %v675 = vpop.xlane.xlu0 %674
  %vm676 = vcmp.eq.f32.partialorder %v673, %v675
  %v677 = vsel %vm676, %v672, inf
  %678 = vmin.xlane.f32.xlu0 %v677
  %v679 = vpop.xlane.xlu0 %678
  %v680 = vcvt.f32.s32 %v679
  %v681 = vcvt.f32.s32 %v675
  %v682 = vshll.u32 %v681, 16
  %v683 = vadd.s32 %v682, %v680
  %v684 = vsel %vm57, %v262, 2147483647
  %v685 = vand.u32 %v684, 65535
  %v686 = vshra.s32 %v684, 16
  %v687 = vcvt.s32.f32 %v685
  %v688 = vcvt.s32.f32 %v686
  %689 = vmin.xlane.f32.xlu0 %v688
  %v690 = vpop.xlane.xlu0 %689
  %vm691 = vcmp.eq.f32.partialorder %v688, %v690
  %v692 = vsel %vm691, %v687, inf
  %693 = vmin.xlane.f32.xlu0 %v692
  %v694 = vpop.xlane.xlu0 %693
  %v695 = vcvt.f32.s32 %v694
  %v696 = vcvt.f32.s32 %v690
  %v697 = vshll.u32 %v696, 16
  %v698 = vadd.s32 %v697, %v695
  %v699 = vsel %vm57, %v263, 2147483647
  %v700 = vand.u32 %v699, 65535
  %v701 = vshra.s32 %v699, 16
  %v702 = vcvt.s32.f32 %v700
  %v703 = vcvt.s32.f32 %v701
  %704 = vmin.xlane.f32.xlu0 %v703
  %v705 = vpop.xlane.xlu0 %704
  %vm706 = vcmp.eq.f32.partialorder %v703, %v705
  %v707 = vsel %vm706, %v702, inf
  %708 = vmin.xlane.f32.xlu0 %v707
  %v709 = vpop.xlane.xlu0 %708
  %v710 = vcvt.f32.s32 %v709
  %v711 = vcvt.f32.s32 %v705
  %v712 = vshll.u32 %v711, 16
  %v713 = vadd.s32 %v712, %v710
  %v714 = vsel %vm57, %v264, 2147483647
  %v715 = vand.u32 %v714, 65535
  %v716 = vshra.s32 %v714, 16
  %v717 = vcvt.s32.f32 %v715
  %v718 = vcvt.s32.f32 %v716
  %719 = vmin.xlane.f32.xlu0 %v718
  %v720 = vpop.xlane.xlu0 %719
  %vm721 = vcmp.eq.f32.partialorder %v718, %v720
  %v722 = vsel %vm721, %v717, inf
  %723 = vmin.xlane.f32.xlu0 %v722
  %v724 = vpop.xlane.xlu0 %723
  %v725 = vcvt.f32.s32 %v724
  %v726 = vcvt.f32.s32 %v720
  %v727 = vshll.u32 %v726, 16
  %v728 = vadd.s32 %v727, %v725
  %v729 = vsel %vm57, %v265, 2147483647
  %v730 = vand.u32 %v729, 65535
  %v731 = vshra.s32 %v729, 16
  %v732 = vcvt.s32.f32 %v730
  %v733 = vcvt.s32.f32 %v731
  %734 = vmin.xlane.f32.xlu0 %v733
  %v735 = vpop.xlane.xlu0 %734
  %vm736 = vcmp.eq.f32.partialorder %v733, %v735
  %v737 = vsel %vm736, %v732, inf
  %738 = vmin.xlane.f32.xlu0 %v737
  %v739 = vpop.xlane.xlu0 %738
  %v740 = vcvt.f32.s32 %v739
  %v741 = vcvt.f32.s32 %v735
  %v742 = vshll.u32 %v741, 16
  %v743 = vadd.s32 %v742, %v740
  %v744 = vsel %vm57, %v266, 2147483647
  %v745 = vand.u32 %v744, 65535
  %v746 = vshra.s32 %v744, 16
  %v747 = vcvt.s32.f32 %v745
  %v748 = vcvt.s32.f32 %v746
  %749 = vmin.xlane.f32.xlu0 %v748
  %v750 = vpop.xlane.xlu0 %749
  %vm751 = vcmp.eq.f32.partialorder %v748, %v750
  %v752 = vsel %vm751, %v747, inf
  %753 = vmin.xlane.f32.xlu0 %v752
  %v754 = vpop.xlane.xlu0 %753
  %v755 = vcvt.f32.s32 %v754
  %v756 = vcvt.f32.s32 %v750
  %v757 = vshll.u32 %v756, 16
  %v758 = vadd.s32 %v757, %v755
  %v759 = vsel %vm57, %v267, 2147483647
  %v760 = vand.u32 %v759, 65535
  %v761 = vshra.s32 %v759, 16
  %v762 = vcvt.s32.f32 %v760
  %v763 = vcvt.s32.f32 %v761
  %764 = vmin.xlane.f32.xlu0 %v763
  %v765 = vpop.xlane.xlu0 %764
  %vm766 = vcmp.eq.f32.partialorder %v763, %v765
  %v767 = vsel %vm766, %v762, inf
  %768 = vmin.xlane.f32.xlu0 %v767
  %v769 = vpop.xlane.xlu0 %768
  %v770 = vcvt.f32.s32 %v769
  %v771 = vcvt.f32.s32 %v765
  %v772 = vshll.u32 %v771, 16
  %v773 = vadd.s32 %v772, %v770
  %v774 = vsel %vm57, %v268, 2147483647
  %v775 = vand.u32 %v774, 65535
  %v776 = vshra.s32 %v774, 16
  %v777 = vcvt.s32.f32 %v775
  %v778 = vcvt.s32.f32 %v776
  %779 = vmin.xlane.f32.xlu0 %v778
  %v780 = vpop.xlane.xlu0 %779
  %vm781 = vcmp.eq.f32.partialorder %v778, %v780
  %v782 = vsel %vm781, %v777, inf
  %783 = vmin.xlane.f32.xlu0 %v782
  %v784 = vpop.xlane.xlu0 %783
  %v785 = vcvt.f32.s32 %v784
  %v786 = vcvt.f32.s32 %v780
  %v787 = vshll.u32 %v786, 16
  %v788 = vadd.s32 %v787, %v785
  %v789 = vsel %vm57, %v269, 2147483647
  %v790 = vand.u32 %v789, 65535
  %v791 = vshra.s32 %v789, 16
  %v792 = vcvt.s32.f32 %v790
  %v793 = vcvt.s32.f32 %v791
  %794 = vmin.xlane.f32.xlu0 %v793
  %v795 = vpop.xlane.xlu0 %794
  %vm796 = vcmp.eq.f32.partialorder %v793, %v795
  %v797 = vsel %vm796, %v792, inf
  %798 = vmin.xlane.f32.xlu0 %v797
  %v799 = vpop.xlane.xlu0 %798
  %v800 = vcvt.f32.s32 %v799
  %v801 = vcvt.f32.s32 %v795
  %v802 = vshll.u32 %v801, 16
  %v803 = vadd.s32 %v802, %v800
  %v804 = vsel %vm57, %v270, 2147483647
  %v805 = vand.u32 %v804, 65535
  %v806 = vshra.s32 %v804, 16
  %v807 = vcvt.s32.f32 %v805
  %v808 = vcvt.s32.f32 %v806
  %809 = vmin.xlane.f32.xlu0 %v808
  %v810 = vpop.xlane.xlu0 %809
  %vm811 = vcmp.eq.f32.partialorder %v808, %v810
  %v812 = vsel %vm811, %v807, inf
  %813 = vmin.xlane.f32.xlu0 %v812
  %v814 = vpop.xlane.xlu0 %813
  %v815 = vcvt.f32.s32 %v814
  %v816 = vcvt.f32.s32 %v810
  %v817 = vshll.u32 %v816, 16
  %v818 = vadd.s32 %v817, %v815
  %v819 = vsel %vm57, %v271, 2147483647
  %v820 = vand.u32 %v819, 65535
  %v821 = vshra.s32 %v819, 16
  %v822 = vcvt.s32.f32 %v820
  %v823 = vcvt.s32.f32 %v821
  %824 = vmin.xlane.f32.xlu0 %v823
  %v825 = vpop.xlane.xlu0 %824
  %vm826 = vcmp.eq.f32.partialorder %v823, %v825
  %v827 = vsel %vm826, %v822, inf
  %828 = vmin.xlane.f32.xlu0 %v827
  %v829 = vpop.xlane.xlu0 %828
  %v830 = vcvt.f32.s32 %v829
  %v831 = vcvt.f32.s32 %v825
  %v832 = vshll.u32 %v831, 16
  %v833 = vadd.s32 %v832, %v830
  %v834 = vsel %vm57, %v272, 2147483647
  %v835 = vand.u32 %v834, 65535
  %v836 = vshra.s32 %v834, 16
  %v837 = vcvt.s32.f32 %v835
  %v838 = vcvt.s32.f32 %v836
  %839 = vmin.xlane.f32.xlu0 %v838
  %v840 = vpop.xlane.xlu0 %839
  %vm841 = vcmp.eq.f32.partialorder %v838, %v840
  %v842 = vsel %vm841, %v837, inf
  %843 = vmin.xlane.f32.xlu0 %v842
  %v844 = vpop.xlane.xlu0 %843
  %v845 = vcvt.f32.s32 %v844
  %v846 = vcvt.f32.s32 %v840
  %v847 = vshll.u32 %v846, 16
  %v848 = vadd.s32 %v847, %v845
  %v849 = vsel %vm57, %v273, 2147483647
  %v850 = vand.u32 %v849, 65535
  %v851 = vshra.s32 %v849, 16
  %v852 = vcvt.s32.f32 %v850
  %v853 = vcvt.s32.f32 %v851
  %854 = vmin.xlane.f32.xlu0 %v853
  %v855 = vpop.xlane.xlu0 %854
  %vm856 = vcmp.eq.f32.partialorder %v853, %v855
  %v857 = vsel %vm856, %v852, inf
  %858 = vmin.xlane.f32.xlu0 %v857
  %v859 = vpop.xlane.xlu0 %858
  %v860 = vcvt.f32.s32 %v859
  %v861 = vcvt.f32.s32 %v855
  %v862 = vshll.u32 %v861, 16
  %v863 = vadd.s32 %v862, %v860
  %v864 = vsel %vm57, %v274, 2147483647
  %v865 = vand.u32 %v864, 65535
  %v866 = vshra.s32 %v864, 16
  %v867 = vcvt.s32.f32 %v865
  %v868 = vcvt.s32.f32 %v866
  %869 = vmin.xlane.f32.xlu0 %v868
  %v870 = vpop.xlane.xlu0 %869
  %vm871 = vcmp.eq.f32.partialorder %v868, %v870
  %v872 = vsel %vm871, %v867, inf
  %873 = vmin.xlane.f32.xlu0 %v872
  %v874 = vpop.xlane.xlu0 %873
  %v875 = vcvt.f32.s32 %v874
  %v876 = vcvt.f32.s32 %v870
  %v877 = vshll.u32 %v876, 16
  %v878 = vadd.s32 %v877, %v875
  %v879 = vsel %vm57, %v275, 2147483647
  %v880 = vand.u32 %v879, 65535
  %v881 = vshra.s32 %v879, 16
  %v882 = vcvt.s32.f32 %v880
  %v883 = vcvt.s32.f32 %v881
  %884 = vmin.xlane.f32.xlu0 %v883
  %v885 = vpop.xlane.xlu0 %884
  %vm886 = vcmp.eq.f32.partialorder %v883, %v885
  %v887 = vsel %vm886, %v882, inf
  %888 = vmin.xlane.f32.xlu0 %v887
  %v889 = vpop.xlane.xlu0 %888
  %v890 = vcvt.f32.s32 %v889
  %v891 = vcvt.f32.s32 %v885
  %v892 = vshll.u32 %v891, 16
  %v893 = vadd.s32 %v892, %v890
  %v894 = vsel %vm57, %v276, 2147483647
  %v895 = vand.u32 %v894, 65535
  %v896 = vshra.s32 %v894, 16
  %v897 = vcvt.s32.f32 %v895
  %v898 = vcvt.s32.f32 %v896
  %899 = vmin.xlane.f32.xlu0 %v898
  %v900 = vpop.xlane.xlu0 %899
  %vm901 = vcmp.eq.f32.partialorder %v898, %v900
  %v902 = vsel %vm901, %v897, inf
  %903 = vmin.xlane.f32.xlu0 %v902
  %v904 = vpop.xlane.xlu0 %903
  %v905 = vcvt.f32.s32 %v904
  %v906 = vcvt.f32.s32 %v900
  %v907 = vshll.u32 %v906, 16
  %v908 = vadd.s32 %v907, %v905
  %v909 = vsel %vm57, %v277, 2147483647
  %v910 = vand.u32 %v909, 65535
  %v911 = vshra.s32 %v909, 16
  %v912 = vcvt.s32.f32 %v910
  %v913 = vcvt.s32.f32 %v911
  %914 = vmin.xlane.f32.xlu0 %v913
  %v915 = vpop.xlane.xlu0 %914
  %vm916 = vcmp.eq.f32.partialorder %v913, %v915
  %v917 = vsel %vm916, %v912, inf
  %918 = vmin.xlane.f32.xlu0 %v917
  %v919 = vpop.xlane.xlu0 %918
  %v920 = vcvt.f32.s32 %v919
  %v921 = vcvt.f32.s32 %v915
  %v922 = vshll.u32 %v921, 16
  %v923 = vadd.s32 %v922, %v920
  %v924 = vsel %vm187, %v278, 2147483647
  %v925 = vand.u32 %v924, 65535
  %v926 = vshra.s32 %v924, 16
  %v927 = vcvt.s32.f32 %v925
  %v928 = vcvt.s32.f32 %v926
  %929 = vmin.xlane.f32.xlu0 %v928
  %v930 = vpop.xlane.xlu0 %929
  %vm931 = vcmp.eq.f32.partialorder %v928, %v930
  %v932 = vsel %vm931, %v927, inf
  %933 = vmin.xlane.f32.xlu0 %v932
  %v934 = vpop.xlane.xlu0 %933
  %v935 = vcvt.f32.s32 %v934
  %v936 = vcvt.f32.s32 %v930
  %v937 = vshll.u32 %v936, 16
  %v938 = vadd.s32 %v937, %v935
  %vm939 = vcmp.eq.s32.totalorder %v56, %v293
  %vm940 = vcmp.eq.s32.totalorder %v56, %v308
  %vm941 = vcmp.eq.s32.totalorder %v56, %v323
  %vm942 = vcmp.eq.s32.totalorder %v56, %v338
  %vm943 = vcmp.eq.s32.totalorder %v56, %v353
  %vm944 = vcmp.eq.s32.totalorder %v56, %v368
  %vm945 = vcmp.eq.s32.totalorder %v56, %v383
  %vm946 = vcmp.eq.s32.totalorder %v56, %v398
  %vm947 = vcmp.eq.s32.totalorder %v56, %v413
  %vm948 = vcmp.eq.s32.totalorder %v56, %v428
  %vm949 = vcmp.eq.s32.totalorder %v56, %v443
  %vm950 = vcmp.eq.s32.totalorder %v56, %v458
  %vm951 = vcmp.eq.s32.totalorder %v56, %v473
  %vm952 = vcmp.eq.s32.totalorder %v56, %v488
  %vm953 = vcmp.eq.s32.totalorder %v56, %v503
  %vm954 = vcmp.eq.s32.totalorder %v56, %v518
  %vm955 = vcmp.eq.s32.totalorder %v56, %v533
  %vm956 = vcmp.eq.s32.totalorder %v56, %v548
  %vm957 = vcmp.eq.s32.totalorder %v56, %v563
  %vm958 = vcmp.eq.s32.totalorder %v56, %v578
  %vm959 = vcmp.eq.s32.totalorder %v56, %v593
  %vm960 = vcmp.eq.s32.totalorder %v56, %v608
  %vm961 = vcmp.eq.s32.totalorder %v56, %v623
  %vm962 = vcmp.eq.s32.totalorder %v56, %v638
  %vm963 = vcmp.eq.s32.totalorder %v56, %v653
  %vm964 = vcmp.eq.s32.totalorder %v56, %v668
  %vm965 = vcmp.eq.s32.totalorder %v56, %v683
  %vm966 = vcmp.eq.s32.totalorder %v56, %v698
  %vm967 = vcmp.eq.s32.totalorder %v56, %v713
  %vm968 = vcmp.eq.s32.totalorder %v56, %v728
  %vm969 = vcmp.eq.s32.totalorder %v56, %v743
  %vm970 = vcmp.eq.s32.totalorder %v56, %v758
  %vm971 = vcmp.eq.s32.totalorder %v56, %v773
  %vm972 = vcmp.eq.s32.totalorder %v56, %v788
  %vm973 = vcmp.eq.s32.totalorder %v56, %v803
  %vm974 = vcmp.eq.s32.totalorder %v56, %v818
  %vm975 = vcmp.eq.s32.totalorder %v56, %v833
  %vm976 = vcmp.eq.s32.totalorder %v56, %v848
  %vm977 = vcmp.eq.s32.totalorder %v56, %v863
  %vm978 = vcmp.eq.s32.totalorder %v56, %v878
  %vm979 = vcmp.eq.s32.totalorder %v56, %v893
  %vm980 = vcmp.eq.s32.totalorder %v56, %v908
  %vm981 = vcmp.eq.s32.totalorder %v56, %v923
  %vm982 = vcmp.eq.s32.totalorder %v56, %v938
  %v983 = vsel %vm939, 1.0, 0.0
  %v984 = vsel %vm940, 1.0, 0.0
  %v985 = vsel %vm941, 1.0, 0.0
  %v986 = vsel %vm942, 1.0, 0.0
  %v987 = vsel %vm943, 1.0, 0.0
  %v988 = vsel %vm944, 1.0, 0.0
  %v989 = vsel %vm945, 1.0, 0.0
  %v990 = vsel %vm946, 1.0, 0.0
  %v991 = vsel %vm947, 1.0, 0.0
  %v992 = vsel %vm948, 1.0, 0.0
  %v993 = vsel %vm949, 1.0, 0.0
  %v994 = vsel %vm950, 1.0, 0.0
  %v995 = vsel %vm951, 1.0, 0.0
  %v996 = vsel %vm952, 1.0, 0.0
  %v997 = vsel %vm953, 1.0, 0.0
  %v998 = vsel %vm954, 1.0, 0.0
  %v999 = vsel %vm955, 1.0, 0.0
  %v1000 = vsel %vm956, 1.0, 0.0
  %v1001 = vsel %vm957, 1.0, 0.0
  %v1002 = vsel %vm958, 1.0, 0.0
  %v1003 = vsel %vm959, 1.0, 0.0
  %v1004 = vsel %vm960, 1.0, 0.0
  %v1005 = vsel %vm961, 1.0, 0.0
  %v1006 = vsel %vm962, 1.0, 0.0
  %v1007 = vsel %vm963, 1.0, 0.0
  %v1008 = vsel %vm964, 1.0, 0.0
  %v1009 = vsel %vm965, 1.0, 0.0
  %v1010 = vsel %vm966, 1.0, 0.0
  %v1011 = vsel %vm967, 1.0, 0.0
  %v1012 = vsel %vm968, 1.0, 0.0
  %v1013 = vsel %vm969, 1.0, 0.0
  %v1014 = vsel %vm970, 1.0, 0.0
  %v1015 = vsel %vm971, 1.0, 0.0
  %v1016 = vsel %vm972, 1.0, 0.0
  %v1017 = vsel %vm973, 1.0, 0.0
  %v1018 = vsel %vm974, 1.0, 0.0
  %v1019 = vsel %vm975, 1.0, 0.0
  %v1020 = vsel %vm976, 1.0, 0.0
  %v1021 = vsel %vm977, 1.0, 0.0
  %v1022 = vsel %vm978, 1.0, 0.0
  %v1023 = vsel %vm979, 1.0, 0.0
  %v1024 = vsel %vm980, 1.0, 0.0
  %v1025 = vsel %vm981, 1.0, 0.0
  %v1026 = vsel %vm982, 1.0, 0.0
  %v1027 = vld [vmem:[%s0] sm:$0xff]
  %v1028 = vld [vmem:[%s0 + $0x8] sm:$0x7]
  %v1030 = vsel %vm57, %v983, 0
  %v1033 = vsel %vm57, %v984, 0
  %v1036 = vsel %vm57, %v985, 0
  %v1039 = vsel %vm57, %v986, 0
  %v1042 = vsel %vm57, %v987, 0
  %v1045 = vsel %vm57, %v988, 0
  %v1048 = vsel %vm57, %v989, 0
  %v1051 = vsel %vm57, %v990, 0
  %v1054 = vsel %vm57, %v991, 0
  %v1057 = vsel %vm57, %v992, 0
  %v1060 = vsel %vm57, %v993, 0
  %v1063 = vsel %vm57, %v994, 0
  %v1066 = vsel %vm57, %v995, 0
  %v1069 = vsel %vm57, %v996, 0
  %v1072 = vsel %vm57, %v997, 0
  %v1075 = vsel %vm57, %v998, 0
  %v1078 = vsel %vm57, %v999, 0
  %v1081 = vsel %vm57, %v1000, 0
  %v1084 = vsel %vm57, %v1001, 0
  %v1087 = vsel %vm57, %v1002, 0
  %v1090 = vsel %vm57, %v1003, 0
  %v1093 = vsel %vm57, %v1004, 0
  %v1096 = vsel %vm57, %v1005, 0
  %v1099 = vsel %vm57, %v1006, 0
  %v1102 = vsel %vm57, %v1007, 0
  %v1105 = vsel %vm57, %v1008, 0
  %v1108 = vsel %vm57, %v1009, 0
  %v1111 = vsel %vm57, %v1010, 0
  %v1114 = vsel %vm57, %v1011, 0
  %v1117 = vsel %vm57, %v1012, 0
  %v1120 = vsel %vm57, %v1013, 0
  %v1123 = vsel %vm57, %v1014, 0
  %v1126 = vsel %vm57, %v1015, 0
  %v1129 = vsel %vm57, %v1016, 0
  %v1132 = vsel %vm57, %v1017, 0
  %v1135 = vsel %vm57, %v1018, 0
  %v1138 = vsel %vm57, %v1019, 0
  %v1141 = vsel %vm57, %v1020, 0
  %v1144 = vsel %vm57, %v1021, 0
  %v1147 = vsel %vm57, %v1022, 0
  %v1150 = vsel %vm57, %v1023, 0
  %v1153 = vsel %vm57, %v1024, 0
  %v1156 = vsel %vm57, %v1025, 0
  %v1159 = vsel %vm57, %v1026, 0
  %vm1161 = vcmask 1042432
  %v1163 = vsel %vm1161, %v1028, 0
  %1165 = vmatpush.msra.mxu0 0.0
  %1166 = vmatpush.msra.mxu0 0.0
  %1167 = vmatpush.msra.mxu0 0.0
  %1168 = vmatpush.msra.mxu0 0.0
  %1169 = vmatpush.msra.mxu0 0.0
  %1170 = vmatpush.msra.mxu0 0.0
  %1171 = vmatpush.msra.mxu0 0.0
  %1172 = vmatpush.msra.mxu0 0.0
  %1173 = vmatpush.msra.mxu0 0.0
  %1174 = vmatpush.msra.mxu0 0.0
  %1175 = vmatpush.msra.mxu0 0.0
  %1176 = vmatpush.msra.mxu0 0.0
  %1177 = vmatpush.msra.mxu0 0.0
  %1178 = vmatpush.msra.mxu0 0.0
  %1179 = vmatpush.msra.mxu0 %v1163
  %1180 = vmatpush.msra.mxu0 %v1027
  %1181 = vmatmul.f32.gmra.mxu0 %v1030
  %v1182 = vpop.f32.mrf.mxu0
  %v1183 = vadd.f32 0.0, %v1182
  %1184 = vmatmul.f32.gmra.mxu0 %v1033
  %v1185 = vpop.f32.mrf.mxu0
  %v1186 = vadd.f32 0.0, %v1185
  %1187 = vmatmul.f32.gmra.mxu0 %v1036
  %v1188 = vpop.f32.mrf.mxu0
  %v1189 = vadd.f32 0.0, %v1188
  %1190 = vmatmul.f32.gmra.mxu0 %v1039
  %v1191 = vpop.f32.mrf.mxu0
  %v1192 = vadd.f32 0.0, %v1191
  %1193 = vmatmul.f32.gmra.mxu0 %v1042
  %v1194 = vpop.f32.mrf.mxu0
  %v1195 = vadd.f32 0.0, %v1194
  %1196 = vmatmul.f32.gmra.mxu0 %v1045
  %v1197 = vpop.f32.mrf.mxu0
  %v1198 = vadd.f32 0.0, %v1197
  %1199 = vmatmul.f32.gmra.mxu0 %v1048
  %v1200 = vpop.f32.mrf.mxu0
  %v1201 = vadd.f32 0.0, %v1200
  %1202 = vmatmul.f32.gmra.mxu0 %v1051
  %v1203 = vpop.f32.mrf.mxu0
  %v1204 = vadd.f32 0.0, %v1203
  %1205 = vmatmul.f32.gmra.mxu0 %v1054
  %v1206 = vpop.f32.mrf.mxu0
  %v1207 = vadd.f32 0.0, %v1206
  %1208 = vmatmul.f32.gmra.mxu0 %v1057
  %v1209 = vpop.f32.mrf.mxu0
  %v1210 = vadd.f32 0.0, %v1209
  %1211 = vmatmul.f32.gmra.mxu0 %v1060
  %v1212 = vpop.f32.mrf.mxu0
  %v1213 = vadd.f32 0.0, %v1212
  %1214 = vmatmul.f32.gmra.mxu0 %v1063
  %v1215 = vpop.f32.mrf.mxu0
  %v1216 = vadd.f32 0.0, %v1215
  %1217 = vmatmul.f32.gmra.mxu0 %v1066
  %v1218 = vpop.f32.mrf.mxu0
  %v1219 = vadd.f32 0.0, %v1218
  %1220 = vmatmul.f32.gmra.mxu0 %v1069
  %v1221 = vpop.f32.mrf.mxu0
  %v1222 = vadd.f32 0.0, %v1221
  %1223 = vmatmul.f32.gmra.mxu0 %v1072
  %v1224 = vpop.f32.mrf.mxu0
  %v1225 = vadd.f32 0.0, %v1224
  %1226 = vmatmul.f32.gmra.mxu0 %v1075
  %v1227 = vpop.f32.mrf.mxu0
  %v1228 = vadd.f32 0.0, %v1227
  %1229 = vmatmul.f32.gmra.mxu0 %v1078
  %v1230 = vpop.f32.mrf.mxu0
  %v1231 = vadd.f32 0.0, %v1230
  %1232 = vmatmul.f32.gmra.mxu0 %v1081
  %v1233 = vpop.f32.mrf.mxu0
  %v1234 = vadd.f32 0.0, %v1233
  %1235 = vmatmul.f32.gmra.mxu0 %v1084
  %v1236 = vpop.f32.mrf.mxu0
  %v1237 = vadd.f32 0.0, %v1236
  %1238 = vmatmul.f32.gmra.mxu0 %v1087
  %v1239 = vpop.f32.mrf.mxu0
  %v1240 = vadd.f32 0.0, %v1239
  %1241 = vmatmul.f32.gmra.mxu0 %v1090
  %v1242 = vpop.f32.mrf.mxu0
  %v1243 = vadd.f32 0.0, %v1242
  %1244 = vmatmul.f32.gmra.mxu0 %v1093
  %v1245 = vpop.f32.mrf.mxu0
  %v1246 = vadd.f32 0.0, %v1245
  %1247 = vmatmul.f32.gmra.mxu0 %v1096
  %v1248 = vpop.f32.mrf.mxu0
  %v1249 = vadd.f32 0.0, %v1248
  %1250 = vmatmul.f32.gmra.mxu0 %v1099
  %v1251 = vpop.f32.mrf.mxu0
  %v1252 = vadd.f32 0.0, %v1251
  %1253 = vmatmul.f32.gmra.mxu0 %v1102
  %v1254 = vpop.f32.mrf.mxu0
  %v1255 = vadd.f32 0.0, %v1254
  %1256 = vmatmul.f32.gmra.mxu0 %v1105
  %v1257 = vpop.f32.mrf.mxu0
  %v1258 = vadd.f32 0.0, %v1257
  %1259 = vmatmul.f32.gmra.mxu0 %v1108
  %v1260 = vpop.f32.mrf.mxu0
  %v1261 = vadd.f32 0.0, %v1260
  %1262 = vmatmul.f32.gmra.mxu0 %v1111
  %v1263 = vpop.f32.mrf.mxu0
  %v1264 = vadd.f32 0.0, %v1263
  %1265 = vmatmul.f32.gmra.mxu0 %v1114
  %v1266 = vpop.f32.mrf.mxu0
  %v1267 = vadd.f32 0.0, %v1266
  %1268 = vmatmul.f32.gmra.mxu0 %v1117
  %v1269 = vpop.f32.mrf.mxu0
  %v1270 = vadd.f32 0.0, %v1269
  %1271 = vmatmul.f32.gmra.mxu0 %v1120
  %v1272 = vpop.f32.mrf.mxu0
  %v1273 = vadd.f32 0.0, %v1272
  %1274 = vmatmul.f32.gmra.mxu0 %v1123
  %v1275 = vpop.f32.mrf.mxu0
  %v1276 = vadd.f32 0.0, %v1275
  %1277 = vmatmul.f32.gmra.mxu0 %v1126
  %v1278 = vpop.f32.mrf.mxu0
  %v1279 = vadd.f32 0.0, %v1278
  %1280 = vmatmul.f32.gmra.mxu0 %v1129
  %v1281 = vpop.f32.mrf.mxu0
  %v1282 = vadd.f32 0.0, %v1281
  %1283 = vmatmul.f32.gmra.mxu0 %v1132
  %v1284 = vpop.f32.mrf.mxu0
  %v1285 = vadd.f32 0.0, %v1284
  %1286 = vmatmul.f32.gmra.mxu0 %v1135
  %v1287 = vpop.f32.mrf.mxu0
  %v1288 = vadd.f32 0.0, %v1287
  %1289 = vmatmul.f32.gmra.mxu0 %v1138
  %v1290 = vpop.f32.mrf.mxu0
  %v1291 = vadd.f32 0.0, %v1290
  %1292 = vmatmul.f32.gmra.mxu0 %v1141
  %v1293 = vpop.f32.mrf.mxu0
  %v1294 = vadd.f32 0.0, %v1293
  %1295 = vmatmul.f32.gmra.mxu0 %v1144
  %v1296 = vpop.f32.mrf.mxu0
  %v1297 = vadd.f32 0.0, %v1296
  %1298 = vmatmul.f32.gmra.mxu0 %v1147
  %v1299 = vpop.f32.mrf.mxu0
  %v1300 = vadd.f32 0.0, %v1299
  %1301 = vmatmul.f32.gmra.mxu0 %v1150
  %v1302 = vpop.f32.mrf.mxu0
  %v1303 = vadd.f32 0.0, %v1302
  %1304 = vmatmul.f32.gmra.mxu0 %v1153
  %v1305 = vpop.f32.mrf.mxu0
  %v1306 = vadd.f32 0.0, %v1305
  %1307 = vmatmul.f32.gmra.mxu0 %v1156
  %v1308 = vpop.f32.mrf.mxu0
  %v1309 = vadd.f32 0.0, %v1308
  %1310 = vmatmul.f32.gmra.mxu0 %v1159
  %v1311 = vpop.f32.mrf.mxu0
  %v1312 = vadd.f32 0.0, %v1311
  %1313 = vdwg.mxu0
  %vm1314 = vcmask 31744
  %1315 = vst.msk [vmem:[%s2] sm:$0xff] %vm1314, %v1183
  %1316 = vst.msk [vmem:[%s2 + $0x8] sm:$0xff] %vm1314, %v1186
  %1317 = vst.msk [vmem:[%s2 + $0x10] sm:$0xff] %vm1314, %v1189
  %1318 = vst.msk [vmem:[%s2 + $0x18] sm:$0xff] %vm1314, %v1192
  %1319 = vst.msk [vmem:[%s2 + $0x20] sm:$0xff] %vm1314, %v1195
  %1320 = vst.msk [vmem:[%s2 + $0x28] sm:$0xff] %vm1314, %v1198
  %1321 = vst.msk [vmem:[%s2 + $0x30] sm:$0xff] %vm1314, %v1201
  %1322 = vst.msk [vmem:[%s2 + $0x38] sm:$0xff] %vm1314, %v1204
  %1323 = vst.msk [vmem:[%s2 + $0x40] sm:$0xff] %vm1314, %v1207
  %1324 = vst.msk [vmem:[%s2 + $0x48] sm:$0xff] %vm1314, %v1210
  %1325 = vst.msk [vmem:[%s2 + $0x50] sm:$0xff] %vm1314, %v1213
  %1326 = vst.msk [vmem:[%s2 + $0x58] sm:$0xff] %vm1314, %v1216
  %1327 = vst.msk [vmem:[%s2 + $0x60] sm:$0xff] %vm1314, %v1219
  %1328 = vst.msk [vmem:[%s2 + $0x68] sm:$0xff] %vm1314, %v1222
  %1329 = vst.msk [vmem:[%s2 + $0x70] sm:$0xff] %vm1314, %v1225
  %1330 = vst.msk [vmem:[%s2 + $0x78] sm:$0xff] %vm1314, %v1228
  %1331 = vst.msk [vmem:[%s2 + $0x80] sm:$0xff] %vm1314, %v1231
  %1332 = vst.msk [vmem:[%s2 + $0x88] sm:$0xff] %vm1314, %v1234
  %1333 = vst.msk [vmem:[%s2 + $0x90] sm:$0xff] %vm1314, %v1237
  %1334 = vst.msk [vmem:[%s2 + $0x98] sm:$0xff] %vm1314, %v1240
  %1335 = vst.msk [vmem:[%s2 + $0xa0] sm:$0xff] %vm1314, %v1243
  %1336 = vst.msk [vmem:[%s2 + $0xa8] sm:$0xff] %vm1314, %v1246
  %1337 = vst.msk [vmem:[%s2 + $0xb0] sm:$0xff] %vm1314, %v1249
  %1338 = vst.msk [vmem:[%s2 + $0xb8] sm:$0xff] %vm1314, %v1252
  %1339 = vst.msk [vmem:[%s2 + $0xc0] sm:$0xff] %vm1314, %v1255
  %1340 = vst.msk [vmem:[%s2 + $0xc8] sm:$0xff] %vm1314, %v1258
  %1341 = vst.msk [vmem:[%s2 + $0xd0] sm:$0xff] %vm1314, %v1261
  %1342 = vst.msk [vmem:[%s2 + $0xd8] sm:$0xff] %vm1314, %v1264
  %1343 = vst.msk [vmem:[%s2 + $0xe0] sm:$0xff] %vm1314, %v1267
  %1344 = vst.msk [vmem:[%s2 + $0xe8] sm:$0xff] %vm1314, %v1270
  %1345 = vst.msk [vmem:[%s2 + $0xf0] sm:$0xff] %vm1314, %v1273
  %1346 = vst.msk [vmem:[%s2 + $0xf8] sm:$0xff] %vm1314, %v1276
  %1347 = vst.msk [vmem:[%s2 + $0x100] sm:$0xff] %vm1314, %v1279
  %1348 = vst.msk [vmem:[%s2 + $0x108] sm:$0xff] %vm1314, %v1282
  %1349 = vst.msk [vmem:[%s2 + $0x110] sm:$0xff] %vm1314, %v1285
  %1350 = vst.msk [vmem:[%s2 + $0x118] sm:$0xff] %vm1314, %v1288
  %1351 = vst.msk [vmem:[%s2 + $0x120] sm:$0xff] %vm1314, %v1291
  %1352 = vst.msk [vmem:[%s2 + $0x128] sm:$0xff] %vm1314, %v1294
  %1353 = vst.msk [vmem:[%s2 + $0x130] sm:$0xff] %vm1314, %v1297
  %1354 = vst.msk [vmem:[%s2 + $0x138] sm:$0xff] %vm1314, %v1300
  %1355 = vst.msk [vmem:[%s2 + $0x140] sm:$0xff] %vm1314, %v1303
  %1356 = vst.msk [vmem:[%s2 + $0x148] sm:$0xff] %vm1314, %v1306
  %1357 = vst.msk [vmem:[%s2 + $0x150] sm:$0xff] %vm1314, %v1309
  %vm1358 = vcmask 25600
  %1359 = vst.msk [vmem:[%s2 + $0x158] sm:$0x3] %vm1358, %v1312
  // Predicated region
  $region10: #{tpu_custom_call.1} parent=0 // pred_check
    _
  $region11: #{tpu_custom_call.1} parent=0 // pred_check_branch
    %1361 = sbr.rel (0) target = $region13
  $region12: #{tpu_custom_call.1} parent=0 // pred_region
    _
  $region13: #{tpu_custom_call.1} parent=0 // pred_fallthru
    _
  // Predicated region
  $region14: #{tpu_custom_call.1} parent=0 // pred_check
    _
  $region15: #{tpu_custom_call.1} parent=0 // pred_check_branch
    %1363 = sbr.rel (0) target = $region17
  $region16: #{tpu_custom_call.1} parent=0 // pred_region
    _
  $region17: #{tpu_custom_call.1} parent=0 // pred_fallthru
    _

</llo_original>
